<compile_context>
chip_gen: v6e
topology: v6e:2x2x1
jax: 0.10.0
libtpu: 0.0.40
codegen_flags: <defaults>
</compile_context>

<pallas_src>
import functools

import jax
import jax.numpy as jnp
from jax.experimental import pallas as pl
from jax.experimental.pallas import tpu as pltpu

# Module hyper-parameters (defaults of AsymmetricLoss_ar.__init__).
GAMMA_NEG = 4
GAMMA_POS = 1
CLIP = 0.05
EPS = 1e-8
OMEGA = True
# TODO(synk): disable_torch_grad_focal_loss / torch.set_grad_enabled only
# affect autograd, not the forward value, so they have no kernel equivalent.


def _round_up(a, m):
    return ((a + m - 1) // m) * m


def _int_pow(t, g: int):
    """t**g for a static non-negative integer g using VPU multiplies only."""
    assert g >= 0
    if g == 0:
        return jnp.ones_like(t)
    r = None
    p = t
    while g:
        if g & 1:
            r = p if r is None else r * p
        g >>= 1
        if g:
            p = p * p
    return r


def _asl_kernel(x_ref, y_ref, cw_ref, o_ref, *, block_b, batch, needs_mask,
                unroll):
    """One grid step: reduce a (block_b, C) tile of the loss into (8, C)."""
    i = pl.program_id(0)
    # Hoisted out of the slab loop; already *1e4 and broadcast to 8 sublanes.
    cw = cw_ref[...].astype(jnp.float32)                      # (8, C)
    o_ref[...] = jnp.zeros_like(o_ref)

    n_slabs = block_b // 8

    def body(k, carry):
        r = pl.multiple_of(k * 8, 8)
        # Cast after the DMA so HBM traffic stays in the native input dtype.
        xs = x_ref[pl.ds(r, 8), :].astype(jnp.float32)        # (8, C) probs
        ys = y_ref[pl.ds(r, 8), :].astype(jnp.float32)        # (8, C) {0,1}
        one_m_y = 1.0 - ys
        # CLIP folded: min((1 + clip) - x, 1) -- one op saved vs sub+add+min.
        xs_neg = jnp.minimum((1.0 + CLIP) - xs, 1.0)
        # Binary-label fusion: pt is the probability of the taken branch, so a
        # single log replaces log(xs_pos)/log(xs_neg).  Requires y in {0, 1}.
        pt = xs * ys + xs_neg * one_m_y
        t = 1.0 - pt
        log_p = jnp.log(jnp.maximum(pt, EPS))                 # single EUP op
        # coeff and focal weight fused (y * (1 - y) == 0):
        #   y == 1 -> cw*1e4 * t**gamma_pos ;  y == 0 -> t**gamma_neg
        w = cw * ys * _int_pow(t, GAMMA_POS) + one_m_y * _int_pow(t, GAMMA_NEG)
        loss = log_p * w
        if needs_mask:
            # Ragged batch tail: rows >= batch hold garbage (possibly NaN)
            # from the partial edge block; select (not multiply) to kill NaN.
            rid = (i * block_b + r
                   + jax.lax.broadcasted_iota(jnp.int32, (8, 1), 0))
            loss = jnp.where(rid < batch, loss, 0.0)
        o_ref[...] += loss
        return carry

    jax.lax.fori_loop(0, n_slabs, body, 0, unroll=unroll)


def asymmetric_loss_ar(x, y, class_weight, *, block_b=None):
    """Pallas implementation of AsymmetricLoss_ar.forward. Returns a scalar.

    x: (B, C) probabilities, y: (B, C) binarized multi-label targets,
    class_weight: (C,) per-class weights.
    """
    B, C = x.shape
    assert y.shape == (B, C)
    assert class_weight.reshape(-1).shape[0] == C

    x_item = jnp.dtype(x.dtype).itemsize
    y_item = jnp.dtype(y.dtype).itemsize

    if block_b is None:
        # ~2 MiB of x per input tile: large enough to amortize the ~0.35 us
        # per-grid-step overhead (>=85% of HBM roofline), small enough that
        # 2 inputs x 2 pipeline buffers stay far below the scoped-VMEM limits
        # on every generation (v5e/v6e 128 MiB, v7x 64 MiB physical).
        target = 2 << 20
        block_b = max(8, (target // max(1, C * x_item)) // 8 * 8)
    block_b = max(8, (block_b // 8) * 8)
    block_b = min(block_b, _round_up(B, 8))
    if B >= 8:
        # Never exceed B: keeps edge blocks as ordinary partial blocks.
        block_b = min(block_b, (B // 8) * 8)
    if B >= 16:
        # Guarantee >= 2 grid steps so the "parallel" axis can split across
        # both v7x TensorCores (v5e/v6e are single-TC, unaffected).
        block_b = min(block_b, _round_up((B + 1) // 2, 8))
    block_b = max(8, block_b)

    nb = (B + block_b - 1) // block_b
    needs_mask = (nb * block_b) != B

    if OMEGA:
        cw_eff = class_weight.reshape(1, C).astype(jnp.float32) * 10000.0
    else:
        cw_eff = jnp.ones((1, C), jnp.float32)
    # Pre-broadcast once (trace-time, tiny) so the kernel never re-broadcasts
    # (1, C) -> (8, C) inside the slab loop.
    cw_eff = jnp.broadcast_to(cw_eff, (8, C))

    # Modest unroll: enough LLO visibility without vreg spills at large C.
    unroll = min(max(1, block_b // 8),
                 4 if C <= 512 else (2 if C <= 2048 else 1))

    kernel = functools.partial(
        _asl_kernel,
        block_b=block_b,
        batch=B,
        needs_mask=needs_mask,
        unroll=unroll,
    )

    tile_bytes = block_b * C * (x_item + y_item)
    # 2 double-buffered inputs + generous slack; floor at 32 MiB (>= default
    # on v6e/v7x), cap at 48 MiB so a v7x (64 MiB physical) never overflows.
    vmem_limit = int(min(48 << 20, max(32 << 20, 2 * tile_bytes + (8 << 20))))

    partials = pl.pallas_call(
        kernel,
        out_shape=jax.ShapeDtypeStruct((nb * 8, C), jnp.float32),
        grid_spec=pltpu.PrefetchScalarGridSpec(
            num_scalar_prefetch=0,
            grid=(nb,),
            in_specs=[
                pl.BlockSpec((block_b, C), lambda i: (i, 0)),
                pl.BlockSpec((block_b, C), lambda i: (i, 0)),
                pl.BlockSpec((8, C), lambda i: (0, 0)),
            ],
            out_specs=pl.BlockSpec((8, C), lambda i: (i, 0)),
        ),
        compiler_params=pltpu.CompilerParams(
            dimension_semantics=("parallel",),
            vmem_limit_bytes=vmem_limit,
        ),
    )(x, y, cw_eff)

    # Tiny final cross-block / cross-class reduction + normalization in JAX.
    return -(jnp.sum(partials) / jnp.float32(B))


def _reference(x, y, class_weight):
    """Straight port of the PyTorch forward (two logs + jnp.power)."""
    x = x.astype(jnp.float32)
    y = y.astype(jnp.float32)
    cw = class_weight.astype(jnp.float32)
    xs_pos = x
    xs_neg = 1.0 - x
    if CLIP is not None and CLIP > 0:
        xs_neg = jnp.minimum(xs_neg + CLIP, 1.0)
    if OMEGA:
        los_pos = cw[None, :] * (y * jnp.log(jnp.maximum(xs_pos, EPS))) * 10000.0
    else:
        los_pos = y * jnp.log(jnp.maximum(xs_pos, EPS))
    los_neg = (1.0 - y) * jnp.log(jnp.maximum(xs_neg, EPS))
    loss = los_pos + los_neg
    if GAMMA_NEG > 0 or GAMMA_POS > 0:
        pt = xs_pos * y + xs_neg * (1.0 - y)
        g = GAMMA_POS * y + GAMMA_NEG * (1.0 - y)
        loss = loss * jnp.power(1.0 - pt, g)
    return -(jnp.sum(loss) / x.shape[0])


if __name__ == "__main__":
    # Case 1: small aligned shapes, explicit block_b=8 -> 2 grid steps.
    key = jax.random.PRNGKey(0)
    k1, k2, k3 = jax.random.split(key, 3)
    B, C = 16, 16
    x = jax.random.uniform(k1, (B, C), jnp.float32, minval=0.01, maxval=0.99)
    y = jax.random.bernoulli(k2, 0.3, (B, C)).astype(jnp.float32)
    cw = jax.random.uniform(k3, (C,), jnp.float32, minval=1e-4, maxval=1e-3)

    out = jax.block_until_ready(asymmetric_loss_ar(x, y, cw, block_b=8))
    ref = _reference(x, y, cw)
    assert jnp.allclose(out, ref, rtol=1e-3, atol=1e-3), (out, ref)

    # Case 2: unaligned B and C (13, 19) -> exercises the no-pad path:
    # full-C blocks (masked stores) + in-kernel ragged-row masking.
    k4, k5, k6 = jax.random.split(jax.random.PRNGKey(1), 3)
    B2, C2 = 13, 19
    x2 = jax.random.uniform(k4, (B2, C2), jnp.float32, minval=0.01, maxval=0.99)
    y2 = jax.random.bernoulli(k5, 0.3, (B2, C2)).astype(jnp.float32)
    cw2 = jax.random.uniform(k6, (C2,), jnp.float32, minval=1e-4, maxval=1e-3)

    out2 = jax.block_until_ready(asymmetric_loss_ar(x2, y2, cw2))
    ref2 = _reference(x2, y2, cw2)
    assert jnp.allclose(out2, ref2, rtol=1e-3, atol=1e-3), (out2, ref2)

    print("KERNEL_OK")
</pallas_src>

<mosaic_0001>
module attributes {stable_mosaic.version = 11 : i64} {
  func.func @_asl_kernel(%arg0: i32, %arg1: memref<8x16xf32, #tpu.memory_space<vmem>>, %arg2: memref<8x16xf32, #tpu.memory_space<vmem>>, %arg3: memref<8x16xf32, #tpu.memory_space<vmem>>, %arg4: memref<8x16xf32, #tpu.memory_space<vmem>>) attributes {dimension_semantics = [#tpu.dimension_semantics<parallel>], iteration_bounds = array<i64: 2>, scalar_prefetch = 0 : i64, scratch_operands = 0 : i64, tpu.core_type = #tpu.core_type<tc>, window_params = [{transform_indices = @transform_0, window_bounds = array<i64: 8, 16>}, {transform_indices = @transform_1, window_bounds = array<i64: 8, 16>}, {pipeline_mode = #tpu.pipeline_mode<synchronous>, transform_indices = @transform_2, window_bounds = array<i64: 8, 16>}, {transform_indices = @transform_3, window_bounds = array<i64: 8, 16>}]} {
    %c0 = arith.constant 0 : index
    %c0_0 = arith.constant 0 : index
    %0 = vector.load %arg3[%c0, %c0_0] : memref<8x16xf32, #tpu.memory_space<vmem>>, vector<8x16xf32>
    %cst = arith.constant 0.000000e+00 : f32
    %1 = vector.broadcast %cst : f32 to vector<8x16xf32>
    %c0_1 = arith.constant 0 : index
    %c0_2 = arith.constant 0 : index
    %2 = vector.load %arg4[%c0_1, %c0_2] : memref<8x16xf32, #tpu.memory_space<vmem>>, vector<8x16xf32>
    tpu.vector_store %arg4[%c0_1, %c0_2], %1 {strides = array<i32>} : memref<8x16xf32, #tpu.memory_space<vmem>>, vector<8x16xf32>,
    %c0_i32 = arith.constant 0 : i32
    %c8_i32 = arith.constant 8 : i32
    %3 = arith.muli %c0_i32, %c8_i32 : i32
    %4 = tpu.assume_multiple %3, 8 : i32
    %5 = arith.index_cast %4 : i32 to index
    %c0_3 = arith.constant 0 : index
    %6 = vector.load %arg1[%5, %c0_3] : memref<8x16xf32, #tpu.memory_space<vmem>>, vector<8x16xf32>
    %7 = arith.index_cast %4 : i32 to index
    %c0_4 = arith.constant 0 : index
    %8 = vector.load %arg2[%7, %c0_4] : memref<8x16xf32, #tpu.memory_space<vmem>>, vector<8x16xf32>
    %cst_5 = arith.constant 1.000000e+00 : f32
    %9 = vector.broadcast %cst_5 : f32 to vector<8x16xf32>
    %10 = arith.subf %9, %8 : vector<8x16xf32>
    %cst_6 = arith.constant 1.050000e+00 : f32
    %11 = vector.broadcast %cst_6 : f32 to vector<8x16xf32>
    %12 = arith.subf %11, %6 : vector<8x16xf32>
    %cst_7 = arith.constant 1.000000e+00 : f32
    %13 = vector.broadcast %cst_7 : f32 to vector<8x16xf32>
    %14 = arith.minimumf %12, %13 : vector<8x16xf32>
    %15 = arith.mulf %6, %8 : vector<8x16xf32>
    %16 = arith.mulf %14, %10 : vector<8x16xf32>
    %17 = arith.addf %15, %16 : vector<8x16xf32>
    %cst_8 = arith.constant 1.000000e+00 : f32
    %18 = vector.broadcast %cst_8 : f32 to vector<8x16xf32>
    %19 = arith.subf %18, %17 : vector<8x16xf32>
    %cst_9 = arith.constant 9.99999993E-9 : f32
    %20 = vector.broadcast %cst_9 : f32 to vector<8x16xf32>
    %21 = arith.maximumf %17, %20 : vector<8x16xf32>
    %22 = math.log %21 : vector<8x16xf32>
    %23 = arith.mulf %0, %8 : vector<8x16xf32>
    %24 = arith.mulf %23, %19 : vector<8x16xf32>
    %25 = arith.mulf %19, %19 : vector<8x16xf32>
    %26 = arith.mulf %25, %25 : vector<8x16xf32>
    %27 = arith.mulf %10, %26 : vector<8x16xf32>
    %28 = arith.addf %24, %27 : vector<8x16xf32>
    %29 = arith.mulf %22, %28 : vector<8x16xf32>
    %c0_10 = arith.constant 0 : index
    %c0_11 = arith.constant 0 : index
    %30 = vector.load %arg4[%c0_10, %c0_11] : memref<8x16xf32, #tpu.memory_space<vmem>>, vector<8x16xf32>
    %31 = arith.addf %30, %29 : vector<8x16xf32>
    %c0_12 = arith.constant 0 : index
    %c0_13 = arith.constant 0 : index
    %32 = vector.load %arg4[%c0_12, %c0_13] : memref<8x16xf32, #tpu.memory_space<vmem>>, vector<8x16xf32>
    tpu.vector_store %arg4[%c0_12, %c0_13], %31 {strides = array<i32>} : memref<8x16xf32, #tpu.memory_space<vmem>>, vector<8x16xf32>,
    %c1_i32 = arith.constant 1 : i32
    return
  }
  func.func @transform_0(%arg0: i32) -> (i32, i32) {
    %c0_i32 = arith.constant 0 : i32
    %c0_i32_0 = arith.constant 0 : i32
    return %arg0, %c0_i32 : i32, i32
  }
  func.func @transform_1(%arg0: i32) -> (i32, i32) {
    %c0_i32 = arith.constant 0 : i32
    %c0_i32_0 = arith.constant 0 : i32
    return %arg0, %c0_i32 : i32, i32
  }
  func.func @transform_2(%arg0: i32) -> (i32, i32) {
    %c0_i32 = arith.constant 0 : i32
    %c0_i32_0 = arith.constant 0 : i32
    %c0_i32_1 = arith.constant 0 : i32
    return %c0_i32, %c0_i32_0 : i32, i32
  }
  func.func @transform_3(%arg0: i32) -> (i32, i32) {
    %c0_i32 = arith.constant 0 : i32
    %c0_i32_0 = arith.constant 0 : i32
    return %arg0, %c0_i32 : i32, i32
  }
}

</mosaic_0001>

<llo_original>
// kernel: tpu_custom_call.1
$region0: #{tpu_custom_call.1}
  #allocation0 [shape = 'u32[]', space=smem, size = 0x4, offset = 0x4, fixed_abs, tag = 'smem constant byte address 0x4 - core index']
  #allocation1 [shape = 'u32[144,128]{1,0:T(1,128)}', space=vmem, size = 0x12000, scoped, tag = 'internal scratch']
  %s0 = inlined_call_operand.hbm [shape: f32[16,16], index: 0, kind: input, shape index: {}]
  %s1 = inlined_call_operand.hbm [shape: f32[16,16], index: 1, kind: input, shape index: {}]
  %s2 = inlined_call_operand.hbm [shape: f32[8,16], index: 2, kind: input, shape index: {}]
  %s3 = inlined_call_operand.hbm [shape: f32[16,16], index: 3, kind: output, shape index: {}]
  %s4 = sld [smem:[#allocation0]]
  $region57: #{tpu_custom_call.1} parent=0
    _
  %s6 = ssub.s32 1, %s4
  %s7 = scalar_select 0, %s6, %s4
  $region1: #{tpu_custom_call.1} parent=0
    #allocation2 [shape = 'u8[8192]{0}', space=vmem, size = 0x2000, scoped, tag = 'input window, operand 0']
    #allocation3 [shape = 's32[2]{0}', space=sflag, size = 0x8, scoped, tag = 'scoped memory for tpu_custom_call.1']
    #allocation4 [shape = 's32[2]{0}', space=sflag, size = 0x8, scoped, tag = 'scoped memory for tpu_custom_call.1']
    #allocation5 [shape = 'u8[8192]{0}', space=vmem, size = 0x2000, scoped, tag = 'input window, operand 1']
    #allocation6 [shape = 's32[2]{0}', space=sflag, size = 0x8, scoped, tag = 'scoped memory for tpu_custom_call.1']
    #allocation7 [shape = 'u8[4096]{0}', space=vmem, size = 0x1000, scoped, tag = 'input window, operand 2, single buffered']
    #allocation8 [shape = 'u8[8192]{0}', space=vmem, size = 0x2000, scoped, tag = 'output window, operand 0']
    %8 = vsyncpa [#allocation3], 0
    %s9 = scalar_lea.sflag [#allocation3], 1
    %10 = vsyncpa %s9, 0
    %11 = vsyncpa [#allocation6], 0
    %s12 = scalar_lea.sflag [#allocation6], 1
    %13 = vsyncpa %s12, 0
    %14 = vsyncpa [#allocation4], 0
    %s15 = scalar_lea.sflag [#allocation4], 1
    %16 = vsyncpa %s15, 0
    loop: start=0, step=1, limit=4
    $region2: #{tpu_custom_call.1} parent=1 // loop_pre_header
      _
    $region3: #{tpu_custom_call.1} parent=1 // loop_header
      %s18 = sphi 0, %s22
      %p19 = scmp.ge.s32.totalorder %s18, 4
      %s28 = sphi 0, %s30
      %s31 = sphi 0, %s28
      %s32 = sphi 0, %s31
      %s48 = sphi 0, %s32
      %s54 = sphi 0, %s56
      %s57 = sphi 0, %s54
      %s58 = sphi 0, %s57
      %s74 = sphi 0, %s58
      %s78 = sphi 0, %s78
      %s80 = sphi 0, %s78
      %s81 = sphi 0, %s80
      %s95 = sphi 0, %s81
      %s101 = sphi 0, %s103
      %s104 = sphi 0, %s101
      %s105 = sphi 0, %s104
      %s121 = sphi 0, %s105
    $region4: #{tpu_custom_call.1} parent=1 // loop_header_branch
      %21 = sbr.rel (%p19) target = $region8
    $region5: #{tpu_custom_call.1} parent=1 // loop_body
      %s23 = ssub.s32 %s18, 1
      %s24 = ssub.s32 %s18, 2
      %s25 = sadd.s32 %s18, 1
      %s26 = ssub.s32 %s18, %s25
      %p27 = scmp.eq.s32.totalorder %s26, 0
      %s29 = sadd.s32 %s28, 1
      %s30 = scalar_select %p27, %s28, %s29
      %p33 = pneg %p27
      %p34 = scmp.eq.s32.totalorder %s18, 1
      %p35 = por %p33, %p34
      %p36 = scmp.ne.s32.totalorder %s28, %s31
      %p37 = scmp.eq.s32.totalorder %s18, 0
      %p38 = por %p36, %p37
      %p39 = scmp.ne.s32.totalorder %s28, %s31
      %p40 = scmp.eq.s32.totalorder %s23, 1
      %p41 = por %p39, %p40
      %p42 = scmp.ne.s32.totalorder %s31, %s32
      %p43 = scmp.eq.s32.totalorder %s23, 0
      %p44 = por %p42, %p43
      %p45 = scmp.ne.s32.totalorder %s31, %s32
      %p46 = scmp.eq.s32.totalorder %s24, 1
      %p47 = por %p45, %p46
      %p49 = scmp.ne.s32.totalorder %s32, %s48
      %p50 = scmp.eq.s32.totalorder %s24, 0
      %p51 = por %p49, %p50
      %s52 = ssub.s32 %s18, %s25
      %p53 = scmp.eq.s32.totalorder %s52, 0
      %s55 = sadd.s32 %s54, 1
      %s56 = scalar_select %p53, %s54, %s55
      %p59 = pneg %p53
      %p60 = scmp.eq.s32.totalorder %s18, 1
      %p61 = por %p59, %p60
      %p62 = scmp.ne.s32.totalorder %s54, %s57
      %p63 = scmp.eq.s32.totalorder %s18, 0
      %p64 = por %p62, %p63
      %p65 = scmp.ne.s32.totalorder %s54, %s57
      %p66 = scmp.eq.s32.totalorder %s23, 1
      %p67 = por %p65, %p66
      %p68 = scmp.ne.s32.totalorder %s57, %s58
      %p69 = scmp.eq.s32.totalorder %s23, 0
      %p70 = por %p68, %p69
      %p71 = scmp.ne.s32.totalorder %s57, %s58
      %p72 = scmp.eq.s32.totalorder %s24, 1
      %p73 = por %p71, %p72
      %p75 = scmp.ne.s32.totalorder %s58, %s74
      %p76 = scmp.eq.s32.totalorder %s24, 0
      %p77 = por %p75, %p76
      %s79 = sadd.s32 %s78, 1
      %p82 = scmp.eq.s32.totalorder %s18, 1
      %p83 = scmp.ne.s32.totalorder %s78, %s80
      %p84 = scmp.eq.s32.totalorder %s18, 0
      %p85 = por %p83, %p84
      %p86 = scmp.ne.s32.totalorder %s78, %s80
      %p87 = scmp.eq.s32.totalorder %s23, 1
      %p88 = por %p86, %p87
      %p89 = scmp.ne.s32.totalorder %s80, %s81
      %p90 = scmp.eq.s32.totalorder %s23, 0
      %p91 = por %p89, %p90
      %p92 = scmp.ne.s32.totalorder %s80, %s81
      %p93 = scmp.eq.s32.totalorder %s24, 1
      %p94 = por %p92, %p93
      %p96 = scmp.ne.s32.totalorder %s81, %s95
      %p97 = scmp.eq.s32.totalorder %s24, 0
      %p98 = por %p96, %p97
      %s99 = ssub.s32 %s18, %s25
      %p100 = scmp.eq.s32.totalorder %s99, 0
      %s102 = sadd.s32 %s101, 1
      %s103 = scalar_select %p100, %s101, %s102
      %p106 = pneg %p100
      %p107 = scmp.eq.s32.totalorder %s18, 1
      %p108 = por %p106, %p107
      %p109 = scmp.ne.s32.totalorder %s101, %s104
      %p110 = scmp.eq.s32.totalorder %s18, 0
      %p111 = por %p109, %p110
      %p112 = scmp.ne.s32.totalorder %s101, %s104
      %p113 = scmp.eq.s32.totalorder %s23, 1
      %p114 = por %p112, %p113
      %p115 = scmp.ne.s32.totalorder %s104, %s105
      %p116 = scmp.eq.s32.totalorder %s23, 0
      %p117 = por %p115, %p116
      %p118 = scmp.ne.s32.totalorder %s104, %s105
      %p119 = scmp.eq.s32.totalorder %s24, 1
      %p120 = por %p118, %p119
      %p122 = scmp.ne.s32.totalorder %s105, %s121
      %p123 = scmp.eq.s32.totalorder %s24, 0
      %p124 = por %p122, %p123
      %p125 = scmp.le.s32.totalorder 1, %s18
      %p126 = scmp.lt.s32.totalorder %s18, 3
      %p127 = pnand %p125, %p126
      %p128 = pneg %p127
      // Predicated region
      $region9: #{tpu_custom_call.1} parent=5 // pred_check
        _
      $region10: #{tpu_custom_call.1} parent=5 // pred_check_branch
        %130 = sbr.rel (%p127) target = $region12
      $region11: #{tpu_custom_call.1} parent=5 // pred_region
        %s131 = ssub.s32 %s18, 1
        // Predicated region
        $region13: #{tpu_custom_call.1} parent=11 // pred_check
          %p132 = pneg %p91
        $region14: #{tpu_custom_call.1} parent=11 // pred_check_branch
          %134 = sbr.rel (%p132) target = $region16
        $region15: #{tpu_custom_call.1} parent=11 // pred_region
          %s136 = ssub.s32 128, 128
          %137 = vsyncadd [#allocation6], %s136
          %s139 = sshll.u32 [#allocation7], 4
          %s140 = int_to_ptr.vmem [resolvable:$true] %s139
          %142 = dma.hbm_to_vmem [thread:$0]  %s2, 128, %s140, [#allocation6]
        $region16: #{tpu_custom_call.1} parent=11 // pred_fallthru
          _
      $region12: #{tpu_custom_call.1} parent=5 // pred_fallthru
        _
      %p143 = scmp.lt.s32.totalorder %s18, 2
      // Predicated region
      $region17: #{tpu_custom_call.1} parent=5 // pred_check
        %p144 = pneg %p143
      $region18: #{tpu_custom_call.1} parent=5 // pred_check_branch
        %146 = sbr.rel (%p144) target = $region20
      $region19: #{tpu_custom_call.1} parent=5 // pred_region
        // Predicated region
        $region21: #{tpu_custom_call.1} parent=19 // pred_check
          %p147 = pneg %p38
        $region22: #{tpu_custom_call.1} parent=19 // pred_check_branch
          %149 = sbr.rel (%p147) target = $region24
        $region23: #{tpu_custom_call.1} parent=19 // pred_region
          %s150 = sand.u32 %s28, 1
          %s151 = scalar_lea.sflag [#allocation3], %s150
          %s152 = sand.u32 %s28, 1
          %s153 = smul.addr %s152, 8
          %s154 = scalar_lea.vmem [#allocation2], %s153
          %s156 = ssub.s32 128, 128
          %157 = vsyncadd %s151, %s156
          %s158 = smul.addr %s18, 128
          %s159 = scalar_lea.hbm %s0, %s158
          %s161 = sshll.u32 %s154, 4
          %s162 = int_to_ptr.vmem [resolvable:$true] %s161
          %164 = dma.hbm_to_vmem [thread:$0]  %s159, 128, %s162, %s151
        $region24: #{tpu_custom_call.1} parent=19 // pred_fallthru
          _
        // Predicated region
        $region25: #{tpu_custom_call.1} parent=19 // pred_check
          %p165 = pneg %p64
        $region26: #{tpu_custom_call.1} parent=19 // pred_check_branch
          %167 = sbr.rel (%p165) target = $region28
        $region27: #{tpu_custom_call.1} parent=19 // pred_region
          %s168 = sand.u32 %s18, 1
          %s169 = scalar_lea.sflag [#allocation6], %s168
          %s170 = sand.u32 %s54, 1
          %s171 = smul.addr %s170, 8
          %s172 = scalar_lea.vmem [#allocation5], %s171
          %s174 = ssub.s32 128, 128
          %175 = vsyncadd %s169, %s174
          %s176 = smul.addr %s18, 128
          %s177 = scalar_lea.hbm %s1, %s176
          %s179 = sshll.u32 %s172, 4
          %s180 = int_to_ptr.vmem [resolvable:$true] %s179
          %182 = dma.hbm_to_vmem [thread:$0]  %s177, 128, %s180, %s169
        $region28: #{tpu_custom_call.1} parent=19 // pred_fallthru
          _
      $region20: #{tpu_custom_call.1} parent=5 // pred_fallthru
        _
      %p183 = scmp.le.s32.totalorder 1, %s18
      %p184 = scmp.lt.s32.totalorder %s18, 3
      %p185 = pnand %p183, %p184
      %p186 = pneg %p185
      // Predicated region
      $region29: #{tpu_custom_call.1} parent=5 // pred_check
        _
      $region30: #{tpu_custom_call.1} parent=5 // pred_check_branch
        %188 = sbr.rel (%p185) target = $region32
      $region31: #{tpu_custom_call.1} parent=5 // pred_region
        %s189 = ssub.s32 %s18, 1
        %s190 = sand.u32 %s31, 1
        %s191 = scalar_lea.sflag [#allocation3], %s190
        %s192 = sand.u32 %s31, 1
        %s193 = smul.addr %s192, 8
        %s194 = scalar_lea.vmem [#allocation2], %s193
        // Predicated region
        $region33: #{tpu_custom_call.1} parent=31 // pred_check
          %p195 = pneg %p44
        $region34: #{tpu_custom_call.1} parent=31 // pred_check_branch
          %197 = sbr.rel (%p195) target = $region36
        $region35: #{tpu_custom_call.1} parent=31 // pred_region
          %198 = dma.done %s191, 128
        $region36: #{tpu_custom_call.1} parent=31 // pred_fallthru
          _
        %s199 = sand.u32 %s23, 1
        %s200 = scalar_lea.sflag [#allocation6], %s199
        %s201 = sand.u32 %s57, 1
        %s202 = smul.addr %s201, 8
        %s203 = scalar_lea.vmem [#allocation5], %s202
        // Predicated region
        $region37: #{tpu_custom_call.1} parent=31 // pred_check
          %p204 = pneg %p70
        $region38: #{tpu_custom_call.1} parent=31 // pred_check_branch
          %206 = sbr.rel (%p204) target = $region40
        $region39: #{tpu_custom_call.1} parent=31 // pred_region
          %207 = dma.done %s200, 128
        $region40: #{tpu_custom_call.1} parent=31 // pred_fallthru
          _
        // Predicated region
        $region41: #{tpu_custom_call.1} parent=31 // pred_check
          %p208 = pneg %p91
        $region42: #{tpu_custom_call.1} parent=31 // pred_check_branch
          %210 = sbr.rel (%p208) target = $region44
        $region43: #{tpu_custom_call.1} parent=31 // pred_region
          %211 = dma.done [#allocation6], 128
        $region44: #{tpu_custom_call.1} parent=31 // pred_fallthru
          _
        %s212 = sand.u32 %s31, 1
        %s213 = scalar_lea.sflag [#allocation3], %s212
        %s214 = sand.u32 %s31, 1
        %s215 = smul.addr %s214, 8
        %s216 = scalar_lea.vmem [#allocation2], %s215
        %p217 = pneg %p44
        %p218 = pneg %p41
        %s219 = sand.u32 %s23, 1
        %s220 = scalar_lea.sflag [#allocation6], %s219
        %s221 = sand.u32 %s57, 1
        %s222 = smul.addr %s221, 8
        %s223 = scalar_lea.vmem [#allocation5], %s222
        %p224 = pneg %p70
        %p225 = pneg %p67
        %p226 = pneg %p91
        %p227 = pneg %p88
        %p228 = pneg %p117
        %p229 = pneg %p114
        %s230 = sand.u32 %s104, 1
        %s231 = scalar_lea.sflag [#allocation4], %s230
        %s232 = sand.u32 %s104, 1
        %s233 = smul.addr %s232, 8
        %s234 = scalar_lea.vmem [#allocation8], %s233
        %v235 = vld [vmem:[#allocation7] sm:$0xff]
        %vm236 = vcmask 130048
        %237 = vst.msk [vmem:[%s234] sm:$0xff] %vm236, 0.0
        %v238 = vld [vmem:[%s194] sm:$0xff]
        %v239 = vld [vmem:[%s203] sm:$0xff]
        %v240 = vsub.f32 1.0, %v239
        %v241 = vsub.f32 1.05, %v238
        %v242 = vmin.f32 %v241, 1.0
        %v243 = vmul.f32 %v238, %v239
        %v244 = vmul.f32 %v242, %v240
        %v245 = vadd.f32 %v243, %v244
        %v246 = vsub.f32 1.0, %v245
        %v247 = vmax.f32 %v245, 1e-08
        %v248 = vlog2.pop %v247
        %v249 = vmul.f32 %v248, 0.6931472
        %v250 = vmul.f32 %v235, %v239
        %v251 = vmul.f32 %v250, %v246
        %v252 = vmul.f32 %v246, %v246
        %v253 = vmul.f32 %v252, %v252
        %v254 = vmul.f32 %v240, %v253
        %v255 = vadd.f32 %v251, %v254
        %v256 = vmul.f32 %v249, %v255
        %v257 = vld [vmem:[%s234] sm:$0xff]
        %v258 = vadd.f32 %v257, %v256
        %259 = vst.msk [vmem:[%s234] sm:$0xff] %vm236, %v258
        %s260 = sand.u32 %s104, 1
        %s261 = scalar_lea.sflag [#allocation4], %s260
        %s262 = sand.u32 %s104, 1
        %s263 = smul.addr %s262, 8
        %s264 = scalar_lea.vmem [#allocation8], %s263
        // Predicated region
        $region45: #{tpu_custom_call.1} parent=31 // pred_check
          %p265 = pneg %p114
        $region46: #{tpu_custom_call.1} parent=31 // pred_check_branch
          %267 = sbr.rel (%p265) target = $region48
        $region47: #{tpu_custom_call.1} parent=31 // pred_region
          %s269 = ssub.s32 128, 128
          %270 = vsyncadd %s261, %s269
          %s271 = smul.addr %s23, 128
          %s272 = scalar_lea.hbm %s3, %s271
          %s274 = sshll.u32 %s264, 4
          %s275 = int_to_ptr.vmem [resolvable:$true] %s274
          %277 = dma.vmem_to_hbm [thread:$0]  %s275, 128, %s272, %s261
        $region48: #{tpu_custom_call.1} parent=31 // pred_fallthru
          _
      $region32: #{tpu_custom_call.1} parent=5 // pred_fallthru
        _
      %p278 = scmp.le.s32.totalorder 2, %s18
      // Predicated region
      $region49: #{tpu_custom_call.1} parent=5 // pred_check
        %p279 = pneg %p278
      $region50: #{tpu_custom_call.1} parent=5 // pred_check_branch
        %281 = sbr.rel (%p279) target = $region52
      $region51: #{tpu_custom_call.1} parent=5 // pred_region
        %s282 = ssub.s32 %s18, 2
        // Predicated region
        $region53: #{tpu_custom_call.1} parent=51 // pred_check
          %p283 = pneg %p120
        $region54: #{tpu_custom_call.1} parent=51 // pred_check_branch
          %285 = sbr.rel (%p283) target = $region56
        $region55: #{tpu_custom_call.1} parent=51 // pred_region
          %s286 = sand.u32 %s105, 1
          %s287 = scalar_lea.sflag [#allocation4], %s286
          %s288 = sand.u32 %s105, 1
          %s289 = smul.addr %s288, 8
          %s290 = scalar_lea.vmem [#allocation8], %s289
          %291 = dma.done %s287, 128
        $region56: #{tpu_custom_call.1} parent=51 // pred_fallthru
          _
      $region52: #{tpu_custom_call.1} parent=5 // pred_fallthru
        _
    $region6: #{tpu_custom_call.1} parent=1 // loop_footer
      %s22 = sadd.s32 1, %s18
    $region7: #{tpu_custom_call.1} parent=1 // loop_footer_branch
      %17 = sbr.rel target = $region3
    $region8: #{tpu_custom_call.1} parent=1 // loop_exit
      _
    %292 = vsyncpa [#allocation3], 1
    %s293 = scalar_lea.sflag [#allocation3], 1
    %294 = vsyncpa %s293, 1
    %295 = vsyncpa [#allocation6], 1
    %s296 = scalar_lea.sflag [#allocation6], 1
    %297 = vsyncpa %s296, 1
    %298 = vsyncpa [#allocation4], 1
    %s299 = scalar_lea.sflag [#allocation4], 1
    %300 = vsyncpa %s299, 1

</llo_original>
